<compile_context>
chip_gen: v7x
topology: tpu7x:2x2x1
jax: 0.10.0
libtpu: 0.0.40
codegen_flags: <defaults>
</compile_context>

<pallas_src>
import functools
import math

import jax
import jax.numpy as jnp
import numpy as np
from jax import lax
from jax.experimental import pallas as pl
from jax.experimental.pallas import tpu as pltpu


# --------------------------------------------------------------------------
# Kernel A: batched q/k/v projections.
# Grid axis r in {0,1,2} selects which of {q, k, v} / {W_Q, W_K, W_V} to do;
# each step is a single [B*T, d_in] @ [d_in, d_model] matmul (bf16 in, f32 acc).
# --------------------------------------------------------------------------
def _qkv_proj_kernel(x_ref, w_ref, b_ref, out_ref):
    x = x_ref[0]                       # [B*T, d_in]     (bf16)
    w = w_ref[0]                       # [d_in, d_model] (bf16)
    acc = jnp.dot(x, w, preferred_element_type=jnp.float32)   # f32 accumulate
    acc = acc + b_ref[0]               # [1, d_model] f32 bias, broadcast rows
    out_ref[0] = acc.astype(out_ref.dtype)


# --------------------------------------------------------------------------
# Kernel B: per-batch attention + fused output projection.
# (Attention scale already folded into the q projection -> no scale here.)
# --------------------------------------------------------------------------
def _attn_kernel(proj_ref, mask_ref, wo_ref, bo_ref, out_ref,
                 *, n_head, d_attn):
    qp = proj_ref[0, 0]                # [T, d_model]  (bf16, pre-scaled)
    kp = proj_ref[1, 0]                # [T, d_model]  (bf16)
    vp = proj_ref[2, 0]                # [T, d_model]  (bf16)
    mask = mask_ref[...]               # [T, T] additive f32 mask (0 / -1e30)
    bo = bo_ref[...]                   # [1, d_model] f32

    T = qp.shape[0]
    d_model = n_head * d_attn
    out_acc = jnp.zeros((T, d_model), dtype=jnp.float32)

    # Static unroll over heads; output projection accumulated per head
    # (no lane-axis concat, short live ranges).
    for h in range(n_head):
        lo = h * d_attn
        qh = qp[:, lo:lo + d_attn]     # [T, d_attn] bf16 (static lane slice)
        kh = kp[:, lo:lo + d_attn]
        vh = vp[:, lo:lo + d_attn]

        # Scores: contract last dims directly -- no explicit kh.T transpose.
        s = lax.dot_general(qh, kh,
                            dimension_numbers=(((1,), (1,)), ((), ())),
                            preferred_element_type=jnp.float32)   # [T, T] f32
        s = s + mask                   # additive mask, no compare/select

        # Numerically stable softmax in f32; reciprocal on the EUP slot.
        m = jnp.max(s, axis=-1, keepdims=True)
        e = jnp.exp(s - m)
        inv = pl.reciprocal(jnp.sum(e, axis=-1, keepdims=True), approx=True)
        p = (e * inv).astype(vh.dtype)                            # bf16 for MXU

        head_out = jnp.dot(p, vh, preferred_element_type=jnp.float32)  # [T, d_attn]

        # Fused output projection: head-major W_O slice, f32 accumulation.
        out_acc = out_acc + jnp.dot(head_out.astype(wo_ref.dtype),
                                    wo_ref[h],
                                    preferred_element_type=jnp.float32)

    out_ref[0] = (out_acc + bo).astype(out_ref.dtype)


# --------------------------------------------------------------------------
# Wrapper
# --------------------------------------------------------------------------
def multi_head_attention(q, k, v, params, mask=None, *, n_head):
    """q, k, v: [B, T, d_in] float32.  Returns [B, T, d_model] float32."""
    B, T, d_in = q.shape
    wq, bq, wk, bk, wv, bv, wo, bo = params
    d_model = wq.shape[1]
    d_attn = d_model // n_head
    bf = jnp.bfloat16
    scale = 1.0 / math.sqrt(d_attn)

    # Fold the 1/sqrt(d_attn) score scale into the q projection (constant,
    # computed once on tiny weights): (x@(s*Wq)+s*bq) . k == s * (q . k).
    wq_s = wq * scale
    bq_s = bq * scale

    # ---- Kernel A: q/k/v projections over all B*T rows --------------------
    x_stack = jnp.stack([q, k, v], axis=0).reshape(3, B * T, d_in).astype(bf)
    w_stack = jnp.stack([wq_s, wk, wv], axis=0).astype(bf)
    b_stack = jnp.stack([bq_s, bk, bv], axis=0).reshape(3, 1, d_model).astype(jnp.float32)

    proj_cost = pl.CostEstimate(
        flops=2 * 3 * B * T * d_in * d_model,
        transcendentals=0,
        bytes_accessed=(3 * B * T * d_in * 2 + 3 * d_in * d_model * 2
                        + 3 * d_model * 4 + 3 * B * T * d_model * 2))

    proj = pl.pallas_call(
        _qkv_proj_kernel,
        out_shape=jax.ShapeDtypeStruct((3, B * T, d_model), bf),
        grid_spec=pltpu.PrefetchScalarGridSpec(
            num_scalar_prefetch=0,
            grid=(3,),
            in_specs=[
                pl.BlockSpec((1, B * T, d_in), lambda r: (r, 0, 0)),     # x
                pl.BlockSpec((1, d_in, d_model), lambda r: (r, 0, 0)),   # W
                pl.BlockSpec((1, 1, d_model), lambda r: (r, 0, 0)),      # b
            ],
            out_specs=pl.BlockSpec((1, B * T, d_model), lambda r: (r, 0, 0)),
        ),
        compiler_params=pltpu.CompilerParams(
            dimension_semantics=("parallel",)),
        cost_estimate=proj_cost,
    )(x_stack, w_stack, b_stack)

    proj = proj.reshape(3, B, T, d_model)          # [3, B, T, d_model] bf16

    # ---- Additive float mask (0 where kept, -1e30 where masked) -----------
    if mask is None:
        mask_f = jnp.zeros((T, T), dtype=jnp.float32)
    else:
        mask_f = jnp.where(mask == 1, jnp.float32(-1e30),
                           jnp.float32(0.0)).astype(jnp.float32)

    # Head-major output-projection weight: [n_head, d_attn, d_model].
    wo3 = wo.reshape(n_head, d_attn, d_model).astype(bf)
    bo2 = bo.reshape(1, d_model).astype(jnp.float32)

    attn_cost = pl.CostEstimate(
        flops=B * (4 * T * T * d_model + 2 * T * d_model * d_model),
        transcendentals=B * n_head * T * T,
        bytes_accessed=(3 * B * T * d_model * 2 + T * T * 4
                        + d_model * d_model * 2 + d_model * 4
                        + B * T * d_model * 4))

    kernel = functools.partial(_attn_kernel, n_head=n_head, d_attn=d_attn)

    return pl.pallas_call(
        kernel,
        out_shape=jax.ShapeDtypeStruct((B, T, d_model), jnp.float32),
        grid_spec=pltpu.PrefetchScalarGridSpec(
            num_scalar_prefetch=0,
            grid=(B,),
            in_specs=[
                pl.BlockSpec((3, 1, T, d_model), lambda b: (0, b, 0, 0)),      # qkv proj
                pl.BlockSpec((T, T), lambda b: (0, 0)),                        # additive mask
                pl.BlockSpec((n_head, d_attn, d_model), lambda b: (0, 0, 0)),  # W_O
                pl.BlockSpec((1, d_model), lambda b: (0, 0)),                  # b_O
            ],
            out_specs=pl.BlockSpec((1, T, d_model), lambda b: (b, 0, 0)),
        ),
        compiler_params=pltpu.CompilerParams(
            dimension_semantics=("parallel",)),
        cost_estimate=attn_cost,
    )(proj, mask_f, wo3, bo2)


# --------------------------------------------------------------------------
# Pure-JAX reference mirroring the module's math with the same mixed-precision
# policy (bf16 MXU operands, f32 accumulation / softmax).
# --------------------------------------------------------------------------
def _reference(q, k, v, params, mask, n_head):
    wq, bq, wk, bk, wv, bv, wo, bo = params
    B, T, _ = q.shape
    d_model = wq.shape[1]
    d_attn = d_model // n_head
    bf = jnp.bfloat16

    def proj(x, w, b):
        y = jnp.dot(x.astype(bf), w.astype(bf),
                    preferred_element_type=jnp.float32) + b
        return y.astype(bf)

    qp, kp, vp = proj(q, wq, bq), proj(k, wk, bk), proj(v, wv, bv)

    def split(x):
        return x.reshape(B, T, n_head, d_attn).transpose(0, 2, 1, 3)

    qh, kh, vh = split(qp), split(kp), split(vp)
    s = jnp.einsum("bhqd,bhkd->bhqk", qh, kh,
                   preferred_element_type=jnp.float32) / math.sqrt(d_attn)
    if mask is not None:
        s = s + jnp.where(mask == 1, -1e30, 0.0).astype(jnp.float32)
    p = jax.nn.softmax(s, axis=-1)
    o = jnp.einsum("bhqk,bhkd->bhqd", p.astype(bf), vh,
                   preferred_element_type=jnp.float32)
    o = o.transpose(0, 2, 1, 3).reshape(B, T, d_model)
    return jnp.dot(o.astype(bf), wo.astype(bf),
                   preferred_element_type=jnp.float32) + bo


if __name__ == "__main__":
    # Small shapes consistent with the module's forward.
    B, T, d_in, d_model, n_head = 2, 8, 32, 32, 4

    key = jax.random.PRNGKey(0)
    keys = jax.random.split(key, 12)

    q = jax.random.normal(keys[0], (B, T, d_in), dtype=jnp.float32)
    k = jax.random.normal(keys[1], (B, T, d_in), dtype=jnp.float32)
    v = jax.random.normal(keys[2], (B, T, d_in), dtype=jnp.float32)

    # Deterministic parameter init (W stored as [in, out]).
    scale_in = 1.0 / math.sqrt(d_in)
    scale_dm = 1.0 / math.sqrt(d_model)
    wq = jax.random.uniform(keys[3], (d_in, d_model), jnp.float32, -scale_in, scale_in)
    bq = jax.random.uniform(keys[4], (d_model,), jnp.float32, -scale_in, scale_in)
    wk = jax.random.uniform(keys[5], (d_in, d_model), jnp.float32, -scale_in, scale_in)
    bk = jax.random.uniform(keys[6], (d_model,), jnp.float32, -scale_in, scale_in)
    wv = jax.random.uniform(keys[7], (d_in, d_model), jnp.float32, -scale_in, scale_in)
    bv = jax.random.uniform(keys[8], (d_model,), jnp.float32, -scale_in, scale_in)
    wo = jax.random.uniform(keys[9], (d_model, d_model), jnp.float32, -scale_dm, scale_dm)
    bo = jax.random.uniform(keys[10], (d_model,), jnp.float32, -scale_dm, scale_dm)
    params = (wq, bq, wk, bk, wv, bv, wo, bo)

    # Causal-style mask (1 == masked), matching `masked_fill(mask == 1, -inf)`.
    mask = jnp.triu(jnp.ones((T, T), dtype=jnp.int32), k=1)

    out = multi_head_attention(q, k, v, params, mask=mask, n_head=n_head)
    out = jax.block_until_ready(out)

    ref = _reference(q, k, v, params, mask, n_head)
    # Tolerance covers bf16 MXU-operand rounding + approx reciprocal +
    # the scale fold into W_Q.
    np.testing.assert_allclose(np.asarray(out), np.asarray(ref),
                               rtol=2e-2, atol=2e-2)

    print("KERNEL_OK")
</pallas_src>

<mosaic_0001>
module attributes {stable_mosaic.version = 11 : i64} {
  func.func @_qkv_proj_kernel(%arg0: i32, %arg1: memref<1x16x32xbf16, #tpu.memory_space<vmem>>, %arg2: memref<1x32x32xbf16, #tpu.memory_space<vmem>>, %arg3: memref<1x1x32xf32, #tpu.memory_space<vmem>>, %arg4: memref<1x16x32xbf16, #tpu.memory_space<vmem>>) attributes {dimension_semantics = [#tpu.dimension_semantics<parallel>], iteration_bounds = array<i64: 3>, scalar_prefetch = 0 : i64, scratch_operands = 0 : i64, tpu.core_type = #tpu.core_type<tc>, window_params = [{transform_indices = @transform_0, window_bounds = array<i64: 1, 16, 32>}, {transform_indices = @transform_1, window_bounds = array<i64: 1, 32, 32>}, {transform_indices = @transform_2, window_bounds = array<i64: 1, 1, 32>}, {transform_indices = @transform_3, window_bounds = array<i64: 1, 16, 32>}]} {
    %c0 = arith.constant 0 : index
    %c0_0 = arith.constant 0 : index
    %c0_1 = arith.constant 0 : index
    %0 = vector.load %arg1[%c0, %c0_0, %c0_1] : memref<1x16x32xbf16, #tpu.memory_space<vmem>>, vector<1x16x32xbf16>
    %1 = vector.shape_cast %0 : vector<1x16x32xbf16> to vector<16x32xbf16>
    %c0_2 = arith.constant 0 : index
    %c0_3 = arith.constant 0 : index
    %c0_4 = arith.constant 0 : index
    %2 = vector.load %arg2[%c0_2, %c0_3, %c0_4] : memref<1x32x32xbf16, #tpu.memory_space<vmem>>, vector<1x32x32xbf16>
    %3 = vector.shape_cast %2 : vector<1x32x32xbf16> to vector<32x32xbf16>
    %cst = arith.constant dense<0.000000e+00> : vector<16x32xf32>
    %4 = tpu.matmul %1, %3, %cst {dimension_numbers = #tpu.dot_dimension_numbers<[1], [0], [0], [1], [0, 0, 1, 1], [], []>} : vector<16x32xbf16>, vector<32x32xbf16>, vector<16x32xf32> -> vector<16x32xf32>
    %c0_5 = arith.constant 0 : index
    %c0_6 = arith.constant 0 : index
    %c0_7 = arith.constant 0 : index
    %5 = vector.load %arg3[%c0_5, %c0_6, %c0_7] : memref<1x1x32xf32, #tpu.memory_space<vmem>>, vector<1x1x32xf32>
    %6 = vector.shape_cast %5 : vector<1x1x32xf32> to vector<1x32xf32>
    %7 = vector.broadcast %6 : vector<1x32xf32> to vector<16x32xf32>
    %8 = arith.addf %4, %7 : vector<16x32xf32>
    %9 = arith.truncf %8 : vector<16x32xf32> to vector<16x32xbf16>
    %c0_8 = arith.constant 0 : index
    %c0_9 = arith.constant 0 : index
    %c0_10 = arith.constant 0 : index
    %10 = vector.load %arg4[%c0_8, %c0_9, %c0_10] : memref<1x16x32xbf16, #tpu.memory_space<vmem>>, vector<1x16x32xbf16>
    %11 = vector.shape_cast %10 : vector<1x16x32xbf16> to vector<16x32xbf16>
    %12 = vector.shape_cast %9 : vector<16x32xbf16> to vector<1x16x32xbf16>
    tpu.vector_store %arg4[%c0_8, %c0_9, %c0_10], %12 {strides = array<i32>} : memref<1x16x32xbf16, #tpu.memory_space<vmem>>, vector<1x16x32xbf16>,
    return
  }
  func.func @transform_0(%arg0: i32) -> (i32, i32, i32) {
    %c0_i32 = arith.constant 0 : i32
    %c0_i32_0 = arith.constant 0 : i32
    %c0_i32_1 = arith.constant 0 : i32
    return %arg0, %c0_i32, %c0_i32_0 : i32, i32, i32
  }
  func.func @transform_1(%arg0: i32) -> (i32, i32, i32) {
    %c0_i32 = arith.constant 0 : i32
    %c0_i32_0 = arith.constant 0 : i32
    %c0_i32_1 = arith.constant 0 : i32
    return %arg0, %c0_i32, %c0_i32_0 : i32, i32, i32
  }
  func.func @transform_2(%arg0: i32) -> (i32, i32, i32) {
    %c0_i32 = arith.constant 0 : i32
    %c0_i32_0 = arith.constant 0 : i32
    %c0_i32_1 = arith.constant 0 : i32
    return %arg0, %c0_i32, %c0_i32_0 : i32, i32, i32
  }
  func.func @transform_3(%arg0: i32) -> (i32, i32, i32) {
    %c0_i32 = arith.constant 0 : i32
    %c0_i32_0 = arith.constant 0 : i32
    %c0_i32_1 = arith.constant 0 : i32
    return %arg0, %c0_i32, %c0_i32_0 : i32, i32, i32
  }
}

</mosaic_0001>

<llo_original>
// kernel: tpu_custom_call.1
$region0: #{tpu_custom_call.1}
  #allocation0 [shape = 'u32[]', space=smem, size = 0x4, offset = 0x4, fixed_abs, tag = 'smem constant byte address 0x4 - core index']
  #allocation1 [shape = 'u32[144,128]{1,0:T(1,128)}', space=vmem, size = 0x12000, scoped, tag = 'internal scratch']
  %s0 = inlined_call_operand.hbm [shape: bf16[3,16,32], index: 0, kind: input, shape index: {}]
  %s1 = inlined_call_operand.hbm [shape: bf16[3,32,32], index: 1, kind: input, shape index: {}]
  %s2 = inlined_call_operand.vmem [shape: f32[3,1,32], index: 2, kind: input, shape index: {}]
  %s3 = inlined_call_operand.hbm [shape: bf16[3,16,32], index: 3, kind: output, shape index: {}]
  %s4 = sld [smem:[#allocation0]]
  $region53: #{tpu_custom_call.1} parent=0
    _
  %s6 = ssub.s32 1, %s4
  %s7 = scalar_select 0, %s6, %s4
  $region1: #{tpu_custom_call.1} parent=0
    #allocation2 [shape = 'u8[8192]{0}', space=vmem, size = 0x2000, scoped, tag = 'input window, operand 0']
    #allocation3 [shape = 's32[2]{0}', space=sflag, size = 0x8, scoped, tag = 'scoped memory for tpu_custom_call.1']
    #allocation4 [shape = 's32[2]{0}', space=sflag, size = 0x8, scoped, tag = 'scoped memory for tpu_custom_call.1']
    #allocation5 [shape = 'u8[16384]{0}', space=vmem, size = 0x4000, scoped, tag = 'input window, operand 1']
    #allocation6 [shape = 's32[2]{0}', space=sflag, size = 0x8, scoped, tag = 'scoped memory for tpu_custom_call.1']
    #allocation7 [shape = 'u8[8192]{0}', space=vmem, size = 0x2000, scoped, tag = 'output window, operand 0']
    %8 = vsyncpa [#allocation3], 0
    %s9 = scalar_lea.sflag [#allocation3], 1
    %10 = vsyncpa %s9, 0
    %11 = vsyncpa [#allocation6], 0
    %s12 = scalar_lea.sflag [#allocation6], 1
    %13 = vsyncpa %s12, 0
    %14 = vsyncpa [#allocation4], 0
    %s15 = scalar_lea.sflag [#allocation4], 1
    %16 = vsyncpa %s15, 0
    loop: start=0, step=1, limit=5
    $region2: #{tpu_custom_call.1} parent=1 // loop_pre_header
      _
    $region3: #{tpu_custom_call.1} parent=1 // loop_header
      %s18 = sphi 0, %s22
      %p19 = scmp.ge.s32.totalorder %s18, 5
      %s28 = sphi 0, %s30
      %s31 = sphi 0, %s28
      %s32 = sphi 0, %s31
      %s48 = sphi 0, %s32
      %s54 = sphi 0, %s56
      %s57 = sphi 0, %s54
      %s58 = sphi 0, %s57
      %s74 = sphi 0, %s58
      %s80 = sphi 0, %s82
      %s83 = sphi 0, %s80
      %s84 = sphi 0, %s83
      %s100 = sphi 0, %s84
      %s106 = sphi 0, %s108
      %s109 = sphi 0, %s106
      %s110 = sphi 0, %s109
      %s126 = sphi 0, %s110
    $region4: #{tpu_custom_call.1} parent=1 // loop_header_branch
      %21 = sbr.rel (%p19) target = $region8
    $region5: #{tpu_custom_call.1} parent=1 // loop_body
      %s23 = ssub.s32 %s18, 1
      %s24 = ssub.s32 %s18, 2
      %s25 = sadd.s32 %s18, 1
      %s26 = ssub.s32 %s18, %s25
      %p27 = scmp.eq.s32.totalorder %s26, 0
      %s29 = sadd.s32 %s28, 1
      %s30 = scalar_select %p27, %s28, %s29
      %p33 = pneg %p27
      %p34 = scmp.eq.s32.totalorder %s18, 2
      %p35 = por %p33, %p34
      %p36 = scmp.ne.s32.totalorder %s28, %s31
      %p37 = scmp.eq.s32.totalorder %s18, 0
      %p38 = por %p36, %p37
      %p39 = scmp.ne.s32.totalorder %s28, %s31
      %p40 = scmp.eq.s32.totalorder %s23, 2
      %p41 = por %p39, %p40
      %p42 = scmp.ne.s32.totalorder %s31, %s32
      %p43 = scmp.eq.s32.totalorder %s23, 0
      %p44 = por %p42, %p43
      %p45 = scmp.ne.s32.totalorder %s31, %s32
      %p46 = scmp.eq.s32.totalorder %s24, 2
      %p47 = por %p45, %p46
      %p49 = scmp.ne.s32.totalorder %s32, %s48
      %p50 = scmp.eq.s32.totalorder %s24, 0
      %p51 = por %p49, %p50
      %s52 = ssub.s32 %s18, %s25
      %p53 = scmp.eq.s32.totalorder %s52, 0
      %s55 = sadd.s32 %s54, 1
      %s56 = scalar_select %p53, %s54, %s55
      %p59 = pneg %p53
      %p60 = scmp.eq.s32.totalorder %s18, 2
      %p61 = por %p59, %p60
      %p62 = scmp.ne.s32.totalorder %s54, %s57
      %p63 = scmp.eq.s32.totalorder %s18, 0
      %p64 = por %p62, %p63
      %p65 = scmp.ne.s32.totalorder %s54, %s57
      %p66 = scmp.eq.s32.totalorder %s23, 2
      %p67 = por %p65, %p66
      %p68 = scmp.ne.s32.totalorder %s57, %s58
      %p69 = scmp.eq.s32.totalorder %s23, 0
      %p70 = por %p68, %p69
      %p71 = scmp.ne.s32.totalorder %s57, %s58
      %p72 = scmp.eq.s32.totalorder %s24, 2
      %p73 = por %p71, %p72
      %p75 = scmp.ne.s32.totalorder %s58, %s74
      %p76 = scmp.eq.s32.totalorder %s24, 0
      %p77 = por %p75, %p76
      %s78 = ssub.s32 %s18, %s25
      %p79 = scmp.eq.s32.totalorder %s78, 0
      %s81 = sadd.s32 %s80, 1
      %s82 = scalar_select %p79, %s80, %s81
      %p85 = pneg %p79
      %p86 = scmp.eq.s32.totalorder %s18, 2
      %p87 = por %p85, %p86
      %p88 = scmp.ne.s32.totalorder %s80, %s83
      %p89 = scmp.eq.s32.totalorder %s18, 0
      %p90 = por %p88, %p89
      %p91 = scmp.ne.s32.totalorder %s80, %s83
      %p92 = scmp.eq.s32.totalorder %s23, 2
      %p93 = por %p91, %p92
      %p94 = scmp.ne.s32.totalorder %s83, %s84
      %p95 = scmp.eq.s32.totalorder %s23, 0
      %p96 = por %p94, %p95
      %p97 = scmp.ne.s32.totalorder %s83, %s84
      %p98 = scmp.eq.s32.totalorder %s24, 2
      %p99 = por %p97, %p98
      %p101 = scmp.ne.s32.totalorder %s84, %s100
      %p102 = scmp.eq.s32.totalorder %s24, 0
      %p103 = por %p101, %p102
      %s104 = ssub.s32 %s18, %s25
      %p105 = scmp.eq.s32.totalorder %s104, 0
      %s107 = sadd.s32 %s106, 1
      %s108 = scalar_select %p105, %s106, %s107
      %p111 = pneg %p105
      %p112 = scmp.eq.s32.totalorder %s18, 2
      %p113 = por %p111, %p112
      %p114 = scmp.ne.s32.totalorder %s106, %s109
      %p115 = scmp.eq.s32.totalorder %s18, 0
      %p116 = por %p114, %p115
      %p117 = scmp.ne.s32.totalorder %s106, %s109
      %p118 = scmp.eq.s32.totalorder %s23, 2
      %p119 = por %p117, %p118
      %p120 = scmp.ne.s32.totalorder %s109, %s110
      %p121 = scmp.eq.s32.totalorder %s23, 0
      %p122 = por %p120, %p121
      %p123 = scmp.ne.s32.totalorder %s109, %s110
      %p124 = scmp.eq.s32.totalorder %s24, 2
      %p125 = por %p123, %p124
      %p127 = scmp.ne.s32.totalorder %s110, %s126
      %p128 = scmp.eq.s32.totalorder %s24, 0
      %p129 = por %p127, %p128
      %p130 = scmp.le.s32.totalorder 1, %s18
      %p131 = scmp.lt.s32.totalorder %s18, 4
      %p132 = pnand %p130, %p131
      %p133 = pneg %p132
      // Predicated region
      $region9: #{tpu_custom_call.1} parent=5 // pred_check
        _
      $region10: #{tpu_custom_call.1} parent=5 // pred_check_branch
        %135 = sbr.rel (%p132) target = $region12
      $region11: #{tpu_custom_call.1} parent=5 // pred_region
        %s136 = ssub.s32 %s18, 1
      $region12: #{tpu_custom_call.1} parent=5 // pred_fallthru
        _
      %p137 = scmp.lt.s32.totalorder %s18, 3
      // Predicated region
      $region13: #{tpu_custom_call.1} parent=5 // pred_check
        %p138 = pneg %p137
      $region14: #{tpu_custom_call.1} parent=5 // pred_check_branch
        %140 = sbr.rel (%p138) target = $region16
      $region15: #{tpu_custom_call.1} parent=5 // pred_region
        // Predicated region
        $region17: #{tpu_custom_call.1} parent=15 // pred_check
          %p141 = pneg %p38
        $region18: #{tpu_custom_call.1} parent=15 // pred_check_branch
          %143 = sbr.rel (%p141) target = $region20
        $region19: #{tpu_custom_call.1} parent=15 // pred_region
          %s144 = sand.u32 %s28, 1
          %s145 = scalar_lea.sflag [#allocation3], %s144
          %s146 = sand.u32 %s28, 1
          %s147 = smul.addr %s146, 8
          %s148 = scalar_lea.vmem [#allocation2], %s147
          %s150 = ssub.s32 128, 128
          %151 = vsyncadd %s145, %s150
          %s152 = smul.addr %s18, 2
          %s153 = smul.addr %s152, 64
          %s154 = scalar_lea.hbm %s0, %s153
          %s155 = sshll.u32 %s148, 4
          %s156 = int_to_ptr.vmem [resolvable:$true] %s155
          %161 = dma.hbm_to_vmem [thread:$0]  %s154, 128, %s156, %s145, 64, 64, 4
        $region20: #{tpu_custom_call.1} parent=15 // pred_fallthru
          _
        // Predicated region
        $region21: #{tpu_custom_call.1} parent=15 // pred_check
          %p162 = pneg %p64
        $region22: #{tpu_custom_call.1} parent=15 // pred_check_branch
          %164 = sbr.rel (%p162) target = $region24
        $region23: #{tpu_custom_call.1} parent=15 // pred_region
          %s165 = sand.u32 %s54, 1
          %s166 = scalar_lea.sflag [#allocation6], %s165
          %s167 = sand.u32 %s54, 1
          %s168 = smul.addr %s167, 16
          %s169 = scalar_lea.vmem [#allocation5], %s168
          %s171 = ssub.s32 256, 256
          %172 = vsyncadd %s166, %s171
          %s173 = smul.addr %s18, 4
          %s174 = smul.addr %s173, 64
          %s175 = scalar_lea.hbm %s1, %s174
          %s176 = sshll.u32 %s169, 4
          %s177 = int_to_ptr.vmem [resolvable:$true] %s176
          %182 = dma.hbm_to_vmem [thread:$0]  %s175, 256, %s177, %s166, 64, 64, 4
        $region24: #{tpu_custom_call.1} parent=15 // pred_fallthru
          _
        // Predicated region
        $region25: #{tpu_custom_call.1} parent=15 // pred_check
          %p183 = pneg %p90
        $region26: #{tpu_custom_call.1} parent=15 // pred_check_branch
          %185 = sbr.rel (%p183) target = $region28
        $region27: #{tpu_custom_call.1} parent=15 // pred_region
          %p186 = scmp.lt.s32.totalorder %s18, 2
          %s187 = scalar_select %p186, %s18, 2
          %s188 = scalar_lea.vmem %s2, %s187
        $region28: #{tpu_custom_call.1} parent=15 // pred_fallthru
          _
      $region16: #{tpu_custom_call.1} parent=5 // pred_fallthru
        _
      %p189 = scmp.le.s32.totalorder 1, %s18
      %p190 = scmp.lt.s32.totalorder %s18, 4
      %p191 = pnand %p189, %p190
      %p192 = pneg %p191
      // Predicated region
      $region29: #{tpu_custom_call.1} parent=5 // pred_check
        _
      $region30: #{tpu_custom_call.1} parent=5 // pred_check_branch
        %194 = sbr.rel (%p191) target = $region32
      $region31: #{tpu_custom_call.1} parent=5 // pred_region
        %s195 = ssub.s32 %s18, 1
        %s196 = sand.u32 %s31, 1
        %s197 = scalar_lea.sflag [#allocation3], %s196
        %s198 = sand.u32 %s31, 1
        %s199 = smul.addr %s198, 8
        %s200 = scalar_lea.vmem [#allocation2], %s199
        // Predicated region
        $region33: #{tpu_custom_call.1} parent=31 // pred_check
          %p201 = pneg %p44
        $region34: #{tpu_custom_call.1} parent=31 // pred_check_branch
          %203 = sbr.rel (%p201) target = $region36
        $region35: #{tpu_custom_call.1} parent=31 // pred_region
          %204 = dma.done %s197, 128
        $region36: #{tpu_custom_call.1} parent=31 // pred_fallthru
          _
        %s205 = sand.u32 %s57, 1
        %s206 = scalar_lea.sflag [#allocation6], %s205
        %s207 = sand.u32 %s57, 1
        %s208 = smul.addr %s207, 16
        %s209 = scalar_lea.vmem [#allocation5], %s208
        // Predicated region
        $region37: #{tpu_custom_call.1} parent=31 // pred_check
          %p210 = pneg %p70
        $region38: #{tpu_custom_call.1} parent=31 // pred_check_branch
          %212 = sbr.rel (%p210) target = $region40
        $region39: #{tpu_custom_call.1} parent=31 // pred_region
          %213 = dma.done %s206, 256
        $region40: #{tpu_custom_call.1} parent=31 // pred_fallthru
          _
        %s214 = sand.u32 %s31, 1
        %s215 = scalar_lea.sflag [#allocation3], %s214
        %s216 = sand.u32 %s31, 1
        %s217 = smul.addr %s216, 8
        %s218 = scalar_lea.vmem [#allocation2], %s217
        %p219 = pneg %p44
        %p220 = pneg %p41
        %s221 = sand.u32 %s57, 1
        %s222 = scalar_lea.sflag [#allocation6], %s221
        %s223 = sand.u32 %s57, 1
        %s224 = smul.addr %s223, 16
        %s225 = scalar_lea.vmem [#allocation5], %s224
        %p226 = pneg %p70
        %p227 = pneg %p67
        %p228 = scmp.lt.s32.totalorder %s23, 2
        %s229 = scalar_select %p228, %s23, 2
        %s230 = scalar_lea.vmem %s2, %s229
        %p231 = pneg %p96
        %p232 = pneg %p93
        %p233 = pneg %p122
        %p234 = pneg %p119
        %s235 = sand.u32 %s109, 1
        %s236 = scalar_lea.sflag [#allocation4], %s235
        %s237 = sand.u32 %s109, 1
        %s238 = smul.addr %s237, 8
        %s239 = scalar_lea.vmem [#allocation7], %s238
        %p240 = scmp.lt.s32.totalorder %s23, 2
        %s241 = scalar_select %p240, %s23, 2
        %s242 = scalar_lea.vmem %s2, %s241
        %v244 = vld [vmem:[%s200] sm:$0xf]
        %v245 = vld [vmem:[%s200 + $0x4] sm:$0xf]
        %v246 = vld [vmem:[%s209] sm:$0xf]
        %v247 = vld [vmem:[%s209 + $0x4] sm:$0xf]
        %v248 = vld [vmem:[%s209 + $0x8] sm:$0xf]
        %v249 = vld [vmem:[%s209 + $0xc] sm:$0xf]
        %v250 = vld [vmem:[%s242] sm:$0x1]
        %v252 = vlaneseq
        %v253 = vshrl.u32 %v252, 7
        %v254 = vsub.s32 0, %v253
        %v255 = vrot.slane %v250, %v254
        %v259 = vunpack.c.l.b16 %v244
        %v260 = vunpack.c.l.b16 %v245
        %v261 = vpack.c.b16 %v260, %v259
        %v266 = vunpack.c.l.b16 %v246
        %v267 = vunpack.c.l.b16 %v247
        %v268 = vunpack.c.l.b16 %v248
        %v269 = vunpack.c.l.b16 %v249
        %v270 = vpack.c.b16 %v267, %v266
        %v271 = vpack.c.b16 %v269, %v268
        %vm274 = vcmask 261120
        %v276 = vsel %vm274, %v261, 0
        %278 = vmatprep.subr.bf16.mxu0 0
        %279 = vmatpush1.bf16.msra.mxu0 %v270
        %280 = vmatprep.subr.bf16.mxu0 0
        %281 = vmatpush1.bf16.msra.mxu0 %v271
        %282 = vmatprep.subr.bf16.mxu0 0
        %283 = vmatpush1.bf16.msra.mxu0 0
        %284 = vmatprep.subr.bf16.mxu0 0
        %285 = vmatpush1.bf16.msra.mxu0 0
        %286 = vmatprep.subr.bf16.mxu0 0
        %287 = vmatpush1.bf16.msra.mxu0 0
        %288 = vmatprep.subr.bf16.mxu0 0
        %289 = vmatpush1.bf16.msra.mxu0 0
        %290 = vmatprep.subr.bf16.mxu0 0
        %291 = vmatpush1.bf16.msra.mxu0 0
        %292 = vmatprep.subr.bf16.mxu0 0
        %293 = vmatpush1.bf16.msra.mxu0 0
        %294 = vmatprep.subr.bf16.mxu0 0
        %295 = vmatpush1.bf16.msra.mxu0 0
        %296 = vmatprep.subr.bf16.mxu0 0
        %297 = vmatpush1.bf16.msra.mxu0 0
        %298 = vmatprep.subr.bf16.mxu0 0
        %299 = vmatpush1.bf16.msra.mxu0 0
        %300 = vmatprep.subr.bf16.mxu0 0
        %301 = vmatpush1.bf16.msra.mxu0 0
        %302 = vmatprep.subr.bf16.mxu0 0
        %303 = vmatpush1.bf16.msra.mxu0 0
        %304 = vmatprep.subr.bf16.mxu0 0
        %305 = vmatpush1.bf16.msra.mxu0 0
        %306 = vmatprep.subr.bf16.mxu0 0
        %307 = vmatpush1.bf16.msra.mxu0 0
        %308 = vmatprep.subr.bf16.mxu0 0
        %309 = vmatpush1.bf16.msra.mxu0 0
        %310 = vmatprep.mubr.bf16.mxu0 0
        %311 = vmatmul.mubr.bf16.gmra.mrb[0].mxu0 %v276
        %v312 = vpop.f32.mrb[0].mxu0
        %v313 = vadd.f32 %v255, %v312
        %v314 = vpop.f32.mrb[0].mxu0
        %v315 = vpop.f32.mrb[0].mxu0
        %v316 = vadd.f32 %v255, %v315
        %v317 = vpop.f32.mrb[0].mxu0
        %318 = vdwg.mxu0
        %v319 = vpack.c.bf16 %v316, %v313
        %v321 = vunpack.c.l.b16 %v319
        %v322 = vunpack.c.h.b16 %v319
        %v323 = vpack.c.b16 %v321, %v321
        %v324 = vpack.c.b16 %v322, %v322
        %vm327 = vcmask 257024
        %328 = vst.msk [vmem:[%s239] sm:$0xf] %vm327, %v323
        %329 = vst.msk [vmem:[%s239 + $0x4] sm:$0xf] %vm327, %v324
        %s330 = sand.u32 %s109, 1
        %s331 = scalar_lea.sflag [#allocation4], %s330
        %s332 = sand.u32 %s109, 1
        %s333 = smul.addr %s332, 8
        %s334 = scalar_lea.vmem [#allocation7], %s333
        // Predicated region
        $region41: #{tpu_custom_call.1} parent=31 // pred_check
          %p335 = pneg %p119
        $region42: #{tpu_custom_call.1} parent=31 // pred_check_branch
          %337 = sbr.rel (%p335) target = $region44
        $region43: #{tpu_custom_call.1} parent=31 // pred_region
          %s339 = ssub.s32 128, 128
          %340 = vsyncadd %s331, %s339
          %s341 = smul.addr %s23, 2
          %s342 = smul.addr %s341, 64
          %s343 = scalar_lea.hbm %s3, %s342
          %s344 = sshll.u32 %s334, 4
          %s345 = int_to_ptr.vmem [resolvable:$true] %s344
          %350 = dma.vmem_to_hbm [thread:$0]  %s345, 128, %s343, %s331, 64, 64, 4
        $region44: #{tpu_custom_call.1} parent=31 // pred_fallthru
          _
      $region32: #{tpu_custom_call.1} parent=5 // pred_fallthru
        _
      %p351 = scmp.le.s32.totalorder 2, %s18
      // Predicated region
      $region45: #{tpu_custom_call.1} parent=5 // pred_check
        %p352 = pneg %p351
      $region46: #{tpu_custom_call.1} parent=5 // pred_check_branch
        %354 = sbr.rel (%p352) target = $region48
      $region47: #{tpu_custom_call.1} parent=5 // pred_region
        %s355 = ssub.s32 %s18, 2
        // Predicated region
        $region49: #{tpu_custom_call.1} parent=47 // pred_check
          %p356 = pneg %p125
        $region50: #{tpu_custom_call.1} parent=47 // pred_check_branch
          %358 = sbr.rel (%p356) target = $region52
        $region51: #{tpu_custom_call.1} parent=47 // pred_region
          %s359 = sand.u32 %s110, 1
          %s360 = scalar_lea.sflag [#allocation4], %s359
          %s361 = sand.u32 %s110, 1
          %s362 = smul.addr %s361, 8
          %s363 = scalar_lea.vmem [#allocation7], %s362
          %364 = dma.done %s360, 128
        $region52: #{tpu_custom_call.1} parent=47 // pred_fallthru
          _
      $region48: #{tpu_custom_call.1} parent=5 // pred_fallthru
        _
    $region6: #{tpu_custom_call.1} parent=1 // loop_footer
      %s22 = sadd.s32 1, %s18
    $region7: #{tpu_custom_call.1} parent=1 // loop_footer_branch
      %17 = sbr.rel target = $region3
    $region8: #{tpu_custom_call.1} parent=1 // loop_exit
      _
    %365 = vsyncpa [#allocation3], 1
    %s366 = scalar_lea.sflag [#allocation3], 1
    %367 = vsyncpa %s366, 1
    %368 = vsyncpa [#allocation6], 1
    %s369 = scalar_lea.sflag [#allocation6], 1
    %370 = vsyncpa %s369, 1
    %371 = vsyncpa [#allocation4], 1
    %s372 = scalar_lea.sflag [#allocation4], 1
    %373 = vsyncpa %s372, 1

</llo_original>
